<compile_context>
chip_gen: v7x
topology: tpu7x:2x2x1
jax: 0.10.0
libtpu: 0.0.40
codegen_flags: <defaults>
</compile_context>

<pallas_src>
import functools

import jax
import jax.numpy as jnp
from jax import lax
from jax.experimental import pallas as pl
from jax.experimental.pallas import tpu as pltpu


def _kernel(x_ref, w_ref, s_ref, b_ref, o_ref, *, n_batch, k_taps, compute_dtype):
    # x_ref: (N, Cin, L) f32   w_ref: (Cout, K*Cin) compute_dtype
    # s_ref: (K, L, L) compute_dtype   b_ref: (Cout, 1) f32
    # o_ref: (N, Cout, L) f32
    w = w_ref[...]
    b = b_ref[...]
    for n in range(n_batch):                 # static unroll: whole batch in one grid step
        x = x_ref[n]                         # (Cin, L) f32 — also the residual
        xc = x.astype(compute_dtype)         # matmul-operand precision
        # Dilated, zero-padded taps via MXU shift matrices (exact: S_k rows are 0/1).
        taps = [jnp.dot(xc, s_ref[k], preferred_element_type=jnp.float32)
                for k in range(k_taps)]      # each (Cin, L)
        # im2col: stack taps on the sublane axis -> single MXU push for the conv.
        x_col = jnp.concatenate(taps, axis=0).astype(compute_dtype)   # (K*Cin, L)
        acc = jnp.dot(w, x_col, preferred_element_type=jnp.float32)   # (Cout, L) f32
        acc = acc + b                                                 # bias (broadcast over L)
        o_ref[n] = (jnp.maximum(acc, 0.0) + x).astype(o_ref.dtype)    # relu + residual (f32)


def tc_res_block(x, w, b, dilation, *, compute_dtype=jnp.bfloat16):
    """x: (N, C, L) float32 (PyTorch NCL). w: (Cout, Cin, K). b: (Cout,)."""
    N, C, L = x.shape
    Cout, Cin, K = w.shape
    assert C == Cin == Cout, "residual add requires in_channels == out_channels"
    # With padding == dilation (as in the module), conv output length == L only
    # for kernel_size == 3; otherwise PyTorch's own residual add would fail too.
    assert K == 3, "padding=dilation preserves length only for kernel_size == 3"
    pad = dilation

    # --- weight-side preprocessing only (tiny; no passes over activations) ---
    # im2col weight: W_col[o, k*Cin + c] = w[o, c, k]
    w_col = jnp.transpose(w, (0, 2, 1)).reshape(Cout, K * Cin).astype(compute_dtype)
    # Shift matrices: S[k, m, l] = 1 iff m == l + (k*dilation - pad), so that
    # (x @ S[k])[c, l] = x[c, l + k*d - pad] with implicit zero padding.
    shifts = jnp.arange(K) * dilation - pad                    # (K,)
    m_idx = jnp.arange(L)[None, :, None]
    l_idx = jnp.arange(L)[None, None, :]
    s_mats = (m_idx == l_idx + shifts[:, None, None]).astype(compute_dtype)  # (K, L, L)
    b2 = b.reshape(Cout, 1).astype(jnp.float32)

    kernel = functools.partial(_kernel, n_batch=N, k_taps=K,
                               compute_dtype=compute_dtype)

    return pl.pallas_call(
        kernel,
        out_shape=jax.ShapeDtypeStruct((N, Cout, L), x.dtype),
        grid=(1,),                                             # whole batch, one step
        in_specs=[
            pl.BlockSpec((N, Cin, L), lambda i: (0, 0, 0)),    # x (NCL, also residual)
            pl.BlockSpec((Cout, K * Cin), lambda i: (0, 0)),   # im2col weights
            pl.BlockSpec((K, L, L), lambda i: (0, 0, 0)),      # shift matrices
            pl.BlockSpec((Cout, 1), lambda i: (0, 0)),         # bias
        ],
        out_specs=pl.BlockSpec((N, Cout, L), lambda i: (0, 0, 0)),
        compiler_params=pltpu.CompilerParams(
            dimension_semantics=("arbitrary",)),
    )(x, w_col, s_mats, b2)


def _reference(x, w, b, dilation, compute_dtype):
    # Pure-JAX reference matching the kernel's precision choice: conv operands
    # rounded to compute_dtype, f32 accumulation; bias/ReLU/residual in f32
    # with the original x.
    xc = x.astype(compute_dtype).astype(jnp.float32)
    wc = w.astype(compute_dtype).astype(jnp.float32)
    y = lax.conv_general_dilated(
        xc, wc,
        window_strides=(1,),
        padding=[(dilation, dilation)],
        rhs_dilation=(dilation,),
        dimension_numbers=("NCH", "OIH", "NCH"),
    ) + b.reshape(1, -1, 1)
    return jnp.maximum(y, 0.0) + x


if __name__ == "__main__":
    # Small shapes consistent with the module: kernelSize=3 so the residual
    # add is shape-valid for any dilation (padding == dilation).
    N, C, L = 2, 32, 16
    K, dilation = 3, 2

    key = jax.random.PRNGKey(0)
    kx, kw, kb = jax.random.split(key, 3)

    x = jax.random.normal(kx, (N, C, L), dtype=jnp.float32)

    # Deterministic init mimicking PyTorch Conv1d default (uniform(-bound, bound),
    # bound = 1/sqrt(fan_in)).
    fan_in = C * K
    bound = 1.0 / jnp.sqrt(jnp.float32(fan_in))
    w = jax.random.uniform(kw, (C, C, K), jnp.float32, -bound, bound)
    b = jax.random.uniform(kb, (C,), jnp.float32, -bound, bound)

    out = jax.block_until_ready(tc_res_block(x, w, b, dilation))
    ref = jax.block_until_ready(_reference(x, w, b, dilation, jnp.bfloat16))

    assert out.shape == (N, C, L)
    assert jnp.allclose(out, ref, atol=1e-4, rtol=1e-4), \
        float(jnp.max(jnp.abs(out - ref)))

    # TODO(synk): nn.Dropout / conv1x1 are unused in forward(); intentionally omitted.
    print("KERNEL_OK")
</pallas_src>

<mosaic_0001>
module attributes {stable_mosaic.version = 11 : i64} {
  func.func @_kernel(%arg0: i32, %arg1: memref<2x32x16xf32, #tpu.memory_space<vmem>>, %arg2: memref<32x96xbf16, #tpu.memory_space<vmem>>, %arg3: memref<3x16x16xbf16, #tpu.memory_space<vmem>>, %arg4: memref<32x1xf32, #tpu.memory_space<vmem>>, %arg5: memref<2x32x16xf32, #tpu.memory_space<vmem>>) attributes {dimension_semantics = [#tpu.dimension_semantics<arbitrary>], iteration_bounds = array<i64: 1>, scalar_prefetch = 0 : i64, scratch_operands = 0 : i64, tpu.core_type = #tpu.core_type<tc>, window_params = [{pipeline_mode = #tpu.pipeline_mode<synchronous>, transform_indices = @transform_0, window_bounds = array<i64: 2, 32, 16>}, {pipeline_mode = #tpu.pipeline_mode<synchronous>, transform_indices = @transform_1, window_bounds = array<i64: 32, 96>}, {pipeline_mode = #tpu.pipeline_mode<synchronous>, transform_indices = @transform_2, window_bounds = array<i64: 3, 16, 16>}, {pipeline_mode = #tpu.pipeline_mode<synchronous>, transform_indices = @transform_3, window_bounds = array<i64: 32, 1>}, {pipeline_mode = #tpu.pipeline_mode<synchronous>, transform_indices = @transform_4, window_bounds = array<i64: 2, 32, 16>}]} {
    %c0 = arith.constant 0 : index
    %c0_0 = arith.constant 0 : index
    %0 = vector.load %arg2[%c0, %c0_0] : memref<32x96xbf16, #tpu.memory_space<vmem>>, vector<32x96xbf16>
    %c0_1 = arith.constant 0 : index
    %c0_2 = arith.constant 0 : index
    %1 = vector.load %arg4[%c0_1, %c0_2] : memref<32x1xf32, #tpu.memory_space<vmem>>, vector<32x1xf32>
    %c0_3 = arith.constant 0 : index
    %c0_4 = arith.constant 0 : index
    %c0_5 = arith.constant 0 : index
    %2 = vector.load %arg1[%c0_3, %c0_4, %c0_5] : memref<2x32x16xf32, #tpu.memory_space<vmem>>, vector<1x32x16xf32>
    %3 = vector.shape_cast %2 : vector<1x32x16xf32> to vector<32x16xf32>
    %4 = arith.truncf %3 : vector<32x16xf32> to vector<32x16xbf16>
    %c0_6 = arith.constant 0 : index
    %c0_7 = arith.constant 0 : index
    %c0_8 = arith.constant 0 : index
    %5 = vector.load %arg3[%c0_6, %c0_7, %c0_8] : memref<3x16x16xbf16, #tpu.memory_space<vmem>>, vector<1x16x16xbf16>
    %6 = vector.shape_cast %5 : vector<1x16x16xbf16> to vector<16x16xbf16>
    %cst = arith.constant dense<0.000000e+00> : vector<32x16xf32>
    %7 = tpu.matmul %4, %6, %cst {dimension_numbers = #tpu.dot_dimension_numbers<[1], [0], [0], [1], [0, 0, 1, 1], [], []>} : vector<32x16xbf16>, vector<16x16xbf16>, vector<32x16xf32> -> vector<32x16xf32>
    %c1 = arith.constant 1 : index
    %c0_9 = arith.constant 0 : index
    %c0_10 = arith.constant 0 : index
    %8 = vector.load %arg3[%c1, %c0_9, %c0_10] : memref<3x16x16xbf16, #tpu.memory_space<vmem>>, vector<1x16x16xbf16>
    %9 = vector.shape_cast %8 : vector<1x16x16xbf16> to vector<16x16xbf16>
    %cst_11 = arith.constant dense<0.000000e+00> : vector<32x16xf32>
    %10 = tpu.matmul %4, %9, %cst_11 {dimension_numbers = #tpu.dot_dimension_numbers<[1], [0], [0], [1], [0, 0, 1, 1], [], []>} : vector<32x16xbf16>, vector<16x16xbf16>, vector<32x16xf32> -> vector<32x16xf32>
    %c2 = arith.constant 2 : index
    %c0_12 = arith.constant 0 : index
    %c0_13 = arith.constant 0 : index
    %11 = vector.load %arg3[%c2, %c0_12, %c0_13] : memref<3x16x16xbf16, #tpu.memory_space<vmem>>, vector<1x16x16xbf16>
    %12 = vector.shape_cast %11 : vector<1x16x16xbf16> to vector<16x16xbf16>
    %cst_14 = arith.constant dense<0.000000e+00> : vector<32x16xf32>
    %13 = tpu.matmul %4, %12, %cst_14 {dimension_numbers = #tpu.dot_dimension_numbers<[1], [0], [0], [1], [0, 0, 1, 1], [], []>} : vector<32x16xbf16>, vector<16x16xbf16>, vector<32x16xf32> -> vector<32x16xf32>
    %14 = tpu.concatenate %7, %10, %13 in 0 : vector<32x16xf32>, vector<32x16xf32>, vector<32x16xf32> -> vector<96x16xf32>
    %15 = arith.truncf %14 : vector<96x16xf32> to vector<96x16xbf16>
    %cst_15 = arith.constant dense<0.000000e+00> : vector<32x16xf32>
    %16 = tpu.matmul %0, %15, %cst_15 {dimension_numbers = #tpu.dot_dimension_numbers<[1], [0], [0], [1], [0, 0, 1, 1], [], []>} : vector<32x96xbf16>, vector<96x16xbf16>, vector<32x16xf32> -> vector<32x16xf32>
    %17 = vector.broadcast %1 : vector<32x1xf32> to vector<32x16xf32>
    %18 = arith.addf %16, %17 : vector<32x16xf32>
    %cst_16 = arith.constant 0.000000e+00 : f32
    %19 = vector.broadcast %cst_16 : f32 to vector<32x16xf32>
    %20 = arith.maximumf %18, %19 : vector<32x16xf32>
    %21 = arith.addf %20, %3 : vector<32x16xf32>
    %c0_17 = arith.constant 0 : index
    %c0_18 = arith.constant 0 : index
    %c0_19 = arith.constant 0 : index
    %22 = vector.load %arg5[%c0_17, %c0_18, %c0_19] : memref<2x32x16xf32, #tpu.memory_space<vmem>>, vector<1x32x16xf32>
    %23 = vector.shape_cast %22 : vector<1x32x16xf32> to vector<32x16xf32>
    %24 = vector.shape_cast %21 : vector<32x16xf32> to vector<1x32x16xf32>
    tpu.vector_store %arg5[%c0_17, %c0_18, %c0_19], %24 {strides = array<i32>} : memref<2x32x16xf32, #tpu.memory_space<vmem>>, vector<1x32x16xf32>,
    %c1_20 = arith.constant 1 : index
    %c0_21 = arith.constant 0 : index
    %c0_22 = arith.constant 0 : index
    %25 = vector.load %arg1[%c1_20, %c0_21, %c0_22] : memref<2x32x16xf32, #tpu.memory_space<vmem>>, vector<1x32x16xf32>
    %26 = vector.shape_cast %25 : vector<1x32x16xf32> to vector<32x16xf32>
    %27 = arith.truncf %26 : vector<32x16xf32> to vector<32x16xbf16>
    %c0_23 = arith.constant 0 : index
    %c0_24 = arith.constant 0 : index
    %c0_25 = arith.constant 0 : index
    %28 = vector.load %arg3[%c0_23, %c0_24, %c0_25] : memref<3x16x16xbf16, #tpu.memory_space<vmem>>, vector<1x16x16xbf16>
    %29 = vector.shape_cast %28 : vector<1x16x16xbf16> to vector<16x16xbf16>
    %cst_26 = arith.constant dense<0.000000e+00> : vector<32x16xf32>
    %30 = tpu.matmul %27, %29, %cst_26 {dimension_numbers = #tpu.dot_dimension_numbers<[1], [0], [0], [1], [0, 0, 1, 1], [], []>} : vector<32x16xbf16>, vector<16x16xbf16>, vector<32x16xf32> -> vector<32x16xf32>
    %c1_27 = arith.constant 1 : index
    %c0_28 = arith.constant 0 : index
    %c0_29 = arith.constant 0 : index
    %31 = vector.load %arg3[%c1_27, %c0_28, %c0_29] : memref<3x16x16xbf16, #tpu.memory_space<vmem>>, vector<1x16x16xbf16>
    %32 = vector.shape_cast %31 : vector<1x16x16xbf16> to vector<16x16xbf16>
    %cst_30 = arith.constant dense<0.000000e+00> : vector<32x16xf32>
    %33 = tpu.matmul %27, %32, %cst_30 {dimension_numbers = #tpu.dot_dimension_numbers<[1], [0], [0], [1], [0, 0, 1, 1], [], []>} : vector<32x16xbf16>, vector<16x16xbf16>, vector<32x16xf32> -> vector<32x16xf32>
    %c2_31 = arith.constant 2 : index
    %c0_32 = arith.constant 0 : index
    %c0_33 = arith.constant 0 : index
    %34 = vector.load %arg3[%c2_31, %c0_32, %c0_33] : memref<3x16x16xbf16, #tpu.memory_space<vmem>>, vector<1x16x16xbf16>
    %35 = vector.shape_cast %34 : vector<1x16x16xbf16> to vector<16x16xbf16>
    %cst_34 = arith.constant dense<0.000000e+00> : vector<32x16xf32>
    %36 = tpu.matmul %27, %35, %cst_34 {dimension_numbers = #tpu.dot_dimension_numbers<[1], [0], [0], [1], [0, 0, 1, 1], [], []>} : vector<32x16xbf16>, vector<16x16xbf16>, vector<32x16xf32> -> vector<32x16xf32>
    %37 = tpu.concatenate %30, %33, %36 in 0 : vector<32x16xf32>, vector<32x16xf32>, vector<32x16xf32> -> vector<96x16xf32>
    %38 = arith.truncf %37 : vector<96x16xf32> to vector<96x16xbf16>
    %cst_35 = arith.constant dense<0.000000e+00> : vector<32x16xf32>
    %39 = tpu.matmul %0, %38, %cst_35 {dimension_numbers = #tpu.dot_dimension_numbers<[1], [0], [0], [1], [0, 0, 1, 1], [], []>} : vector<32x96xbf16>, vector<96x16xbf16>, vector<32x16xf32> -> vector<32x16xf32>
    %40 = vector.broadcast %1 : vector<32x1xf32> to vector<32x16xf32>
    %41 = arith.addf %39, %40 : vector<32x16xf32>
    %cst_36 = arith.constant 0.000000e+00 : f32
    %42 = vector.broadcast %cst_36 : f32 to vector<32x16xf32>
    %43 = arith.maximumf %41, %42 : vector<32x16xf32>
    %44 = arith.addf %43, %26 : vector<32x16xf32>
    %c1_37 = arith.constant 1 : index
    %c0_38 = arith.constant 0 : index
    %c0_39 = arith.constant 0 : index
    %45 = vector.load %arg5[%c1_37, %c0_38, %c0_39] : memref<2x32x16xf32, #tpu.memory_space<vmem>>, vector<1x32x16xf32>
    %46 = vector.shape_cast %45 : vector<1x32x16xf32> to vector<32x16xf32>
    %47 = vector.shape_cast %44 : vector<32x16xf32> to vector<1x32x16xf32>
    tpu.vector_store %arg5[%c1_37, %c0_38, %c0_39], %47 {strides = array<i32>} : memref<2x32x16xf32, #tpu.memory_space<vmem>>, vector<1x32x16xf32>,
    return
  }
  func.func @transform_0(%arg0: i32) -> (i32, i32, i32) {
    %c0_i32 = arith.constant 0 : i32
    %c0_i32_0 = arith.constant 0 : i32
    %c0_i32_1 = arith.constant 0 : i32
    %c0_i32_2 = arith.constant 0 : i32
    return %c0_i32, %c0_i32_0, %c0_i32_1 : i32, i32, i32
  }
  func.func @transform_1(%arg0: i32) -> (i32, i32) {
    %c0_i32 = arith.constant 0 : i32
    %c0_i32_0 = arith.constant 0 : i32
    %c0_i32_1 = arith.constant 0 : i32
    return %c0_i32, %c0_i32_0 : i32, i32
  }
  func.func @transform_2(%arg0: i32) -> (i32, i32, i32) {
    %c0_i32 = arith.constant 0 : i32
    %c0_i32_0 = arith.constant 0 : i32
    %c0_i32_1 = arith.constant 0 : i32
    %c0_i32_2 = arith.constant 0 : i32
    return %c0_i32, %c0_i32_0, %c0_i32_1 : i32, i32, i32
  }
  func.func @transform_3(%arg0: i32) -> (i32, i32) {
    %c0_i32 = arith.constant 0 : i32
    %c0_i32_0 = arith.constant 0 : i32
    %c0_i32_1 = arith.constant 0 : i32
    return %c0_i32, %c0_i32_0 : i32, i32
  }
  func.func @transform_4(%arg0: i32) -> (i32, i32, i32) {
    %c0_i32 = arith.constant 0 : i32
    %c0_i32_0 = arith.constant 0 : i32
    %c0_i32_1 = arith.constant 0 : i32
    %c0_i32_2 = arith.constant 0 : i32
    return %c0_i32, %c0_i32_0, %c0_i32_1 : i32, i32, i32
  }
}

</mosaic_0001>

<llo_original>
// kernel: tpu_custom_call.1
$region0: #{tpu_custom_call.1}
  #allocation0 [shape = 'u32[]', space=smem, size = 0x4, offset = 0x4, fixed_abs, tag = 'smem constant byte address 0x4 - core index']
  #allocation1 [shape = 'u32[144,128]{1,0:T(1,128)}', space=vmem, size = 0x12000, scoped, tag = 'internal scratch']
  %s0 = inlined_call_operand.vmem [shape: f32[2,32,16], index: 0, kind: input, shape index: {}]
  %s1 = inlined_call_operand.vmem [shape: bf16[32,96], index: 1, kind: input, shape index: {}]
  %s2 = inlined_call_operand.vmem [shape: bf16[3,16,16], index: 2, kind: input, shape index: {}]
  %s3 = inlined_call_operand.vmem [shape: f32[32,1], index: 3, kind: input, shape index: {}]
  %s4 = inlined_call_operand.vmem [shape: f32[2,32,16], index: 4, kind: output, shape index: {}]
  %s5 = sld [smem:[#allocation0]]
  $region26: #{tpu_custom_call.1} parent=0
    _
  %s7 = ssub.s32 1, %s5
  %s8 = scalar_select 0, %s7, %s5
  // Predicated region
  $region2: #{tpu_custom_call.1} parent=0 // pred_check
    _
  $region3: #{tpu_custom_call.1} parent=0 // pred_check_branch
    %10 = sbr.rel (0) target = $region5
  $region4: #{tpu_custom_call.1} parent=0 // pred_region
    _
  $region5: #{tpu_custom_call.1} parent=0 // pred_fallthru
    _
  // Predicated region
  $region6: #{tpu_custom_call.1} parent=0 // pred_check
    _
  $region7: #{tpu_custom_call.1} parent=0 // pred_check_branch
    %12 = sbr.rel (0) target = $region9
  $region8: #{tpu_custom_call.1} parent=0 // pred_region
    _
  $region9: #{tpu_custom_call.1} parent=0 // pred_fallthru
    _
  // Predicated region
  $region10: #{tpu_custom_call.1} parent=0 // pred_check
    _
  $region11: #{tpu_custom_call.1} parent=0 // pred_check_branch
    %14 = sbr.rel (0) target = $region13
  $region12: #{tpu_custom_call.1} parent=0 // pred_region
    _
  $region13: #{tpu_custom_call.1} parent=0 // pred_fallthru
    _
  // Predicated region
  $region14: #{tpu_custom_call.1} parent=0 // pred_check
    _
  $region15: #{tpu_custom_call.1} parent=0 // pred_check_branch
    %16 = sbr.rel (0) target = $region17
  $region16: #{tpu_custom_call.1} parent=0 // pred_region
    _
  $region17: #{tpu_custom_call.1} parent=0 // pred_fallthru
    _
  %v18 = vld [vmem:[%s1] sm:$0xf]
  %v19 = vld [vmem:[%s1 + $0x4] sm:$0xf]
  %v20 = vld [vmem:[%s1 + $0x8] sm:$0xf]
  %v21 = vld [vmem:[%s1 + $0xc] sm:$0xf]
  %v22 = vld [vmem:[%s3] sm:$0xff]
  %v23 = vld [vmem:[%s3 + $0x8] sm:$0xff]
  %v24 = vld [vmem:[%s3 + $0x10] sm:$0xff]
  %v25 = vld [vmem:[%s3 + $0x18] sm:$0xff]
  %v26 = vld [vmem:[%s0] sm:$0xff]
  %v27 = vld [vmem:[%s0 + $0x8] sm:$0xff]
  %v28 = vld [vmem:[%s0 + $0x10] sm:$0xff]
  %v29 = vld [vmem:[%s0 + $0x18] sm:$0xff]
  %v30 = vpack.c.bf16 %v27, %v26
  %v31 = vpack.c.bf16 %v29, %v28
  %v32 = vld [vmem:[%s2] sm:$0xf]
  %v33 = vld [vmem:[%s2 + $0x4] sm:$0xf]
  %v36 = vunpack.c.l.b16 %v32
  %v37 = vunpack.c.l.b16 %v33
  %v38 = vpack.c.b16 %v37, %v36
  %vm40 = vcmask 130048
  %v42 = vsel %vm40, %v30, 0
  %v45 = vsel %vm40, %v31, 0
  %47 = vmatprep.subr.bf16.mxu0 0
  %48 = vmatpush1.bf16.msra.mxu0 %v38
  %49 = vmatprep.subr.bf16.mxu0 0
  %50 = vmatpush1.bf16.msra.mxu0 0
  %51 = vmatprep.subr.bf16.mxu0 0
  %52 = vmatpush1.bf16.msra.mxu0 0
  %53 = vmatprep.subr.bf16.mxu0 0
  %54 = vmatpush1.bf16.msra.mxu0 0
  %55 = vmatprep.subr.bf16.mxu0 0
  %56 = vmatpush1.bf16.msra.mxu0 0
  %57 = vmatprep.subr.bf16.mxu0 0
  %58 = vmatpush1.bf16.msra.mxu0 0
  %59 = vmatprep.subr.bf16.mxu0 0
  %60 = vmatpush1.bf16.msra.mxu0 0
  %61 = vmatprep.subr.bf16.mxu0 0
  %62 = vmatpush1.bf16.msra.mxu0 0
  %63 = vmatprep.subr.bf16.mxu0 0
  %64 = vmatpush1.bf16.msra.mxu0 0
  %65 = vmatprep.subr.bf16.mxu0 0
  %66 = vmatpush1.bf16.msra.mxu0 0
  %67 = vmatprep.subr.bf16.mxu0 0
  %68 = vmatpush1.bf16.msra.mxu0 0
  %69 = vmatprep.subr.bf16.mxu0 0
  %70 = vmatpush1.bf16.msra.mxu0 0
  %71 = vmatprep.subr.bf16.mxu0 0
  %72 = vmatpush1.bf16.msra.mxu0 0
  %73 = vmatprep.subr.bf16.mxu0 0
  %74 = vmatpush1.bf16.msra.mxu0 0
  %75 = vmatprep.subr.bf16.mxu0 0
  %76 = vmatpush1.bf16.msra.mxu0 0
  %77 = vmatprep.subr.bf16.mxu0 0
  %78 = vmatpush1.bf16.msra.mxu0 0
  %79 = vmatprep.mubr.bf16.mxu0 0
  %80 = vmatmul.mubr.bf16.gmra.mrb[0].mxu0 %v42
  %v81 = vpop.f32.mrb[0].mxu0
  %v82 = vadd.f32 0.0, %v81
  %v83 = vpop.f32.mrb[0].mxu0
  %v84 = vpop.f32.mrb[0].mxu0
  %v85 = vadd.f32 0.0, %v84
  %v86 = vpop.f32.mrb[0].mxu0
  %87 = vmatprep.mubr.bf16.mxu0 0
  %88 = vmatmul.mubr.bf16.gmra.mrb[0].mxu0 %v45
  %v89 = vpop.f32.mrb[0].mxu0
  %v90 = vadd.f32 0.0, %v89
  %v91 = vpop.f32.mrb[0].mxu0
  %v92 = vpop.f32.mrb[0].mxu0
  %v93 = vadd.f32 0.0, %v92
  %v94 = vpop.f32.mrb[0].mxu0
  %95 = vdwg.mxu0
  %s96 = scalar_lea.vmem %s2, 8
  %v97 = vld [vmem:[%s96] sm:$0xf]
  %v98 = vld [vmem:[%s96 + $0x4] sm:$0xf]
  %v101 = vunpack.c.l.b16 %v97
  %v102 = vunpack.c.l.b16 %v98
  %v103 = vpack.c.b16 %v102, %v101
  %105 = vmatprep.subr.bf16.mxu0 0
  %106 = vmatpush1.bf16.msra.mxu0 %v103
  %107 = vmatprep.subr.bf16.mxu0 0
  %108 = vmatpush1.bf16.msra.mxu0 0
  %109 = vmatprep.subr.bf16.mxu0 0
  %110 = vmatpush1.bf16.msra.mxu0 0
  %111 = vmatprep.subr.bf16.mxu0 0
  %112 = vmatpush1.bf16.msra.mxu0 0
  %113 = vmatprep.subr.bf16.mxu0 0
  %114 = vmatpush1.bf16.msra.mxu0 0
  %115 = vmatprep.subr.bf16.mxu0 0
  %116 = vmatpush1.bf16.msra.mxu0 0
  %117 = vmatprep.subr.bf16.mxu0 0
  %118 = vmatpush1.bf16.msra.mxu0 0
  %119 = vmatprep.subr.bf16.mxu0 0
  %120 = vmatpush1.bf16.msra.mxu0 0
  %121 = vmatprep.subr.bf16.mxu0 0
  %122 = vmatpush1.bf16.msra.mxu0 0
  %123 = vmatprep.subr.bf16.mxu0 0
  %124 = vmatpush1.bf16.msra.mxu0 0
  %125 = vmatprep.subr.bf16.mxu0 0
  %126 = vmatpush1.bf16.msra.mxu0 0
  %127 = vmatprep.subr.bf16.mxu0 0
  %128 = vmatpush1.bf16.msra.mxu0 0
  %129 = vmatprep.subr.bf16.mxu0 0
  %130 = vmatpush1.bf16.msra.mxu0 0
  %131 = vmatprep.subr.bf16.mxu0 0
  %132 = vmatpush1.bf16.msra.mxu0 0
  %133 = vmatprep.subr.bf16.mxu0 0
  %134 = vmatpush1.bf16.msra.mxu0 0
  %135 = vmatprep.subr.bf16.mxu0 0
  %136 = vmatpush1.bf16.msra.mxu0 0
  %137 = vmatprep.mubr.bf16.mxu0 0
  %138 = vmatmul.mubr.bf16.gmra.mrb[0].mxu0 %v42
  %v139 = vpop.f32.mrb[0].mxu0
  %v140 = vadd.f32 0.0, %v139
  %v141 = vpop.f32.mrb[0].mxu0
  %v142 = vpop.f32.mrb[0].mxu0
  %v143 = vadd.f32 0.0, %v142
  %v144 = vpop.f32.mrb[0].mxu0
  %145 = vmatprep.mubr.bf16.mxu0 0
  %146 = vmatmul.mubr.bf16.gmra.mrb[0].mxu0 %v45
  %v147 = vpop.f32.mrb[0].mxu0
  %v148 = vadd.f32 0.0, %v147
  %v149 = vpop.f32.mrb[0].mxu0
  %v150 = vpop.f32.mrb[0].mxu0
  %v151 = vadd.f32 0.0, %v150
  %v152 = vpop.f32.mrb[0].mxu0
  %153 = vdwg.mxu0
  %s154 = scalar_lea.vmem %s2, 16
  %v155 = vld [vmem:[%s154] sm:$0xf]
  %v156 = vld [vmem:[%s154 + $0x4] sm:$0xf]
  %v159 = vunpack.c.l.b16 %v155
  %v160 = vunpack.c.l.b16 %v156
  %v161 = vpack.c.b16 %v160, %v159
  %163 = vmatprep.subr.bf16.mxu0 0
  %164 = vmatpush1.bf16.msra.mxu0 %v161
  %165 = vmatprep.subr.bf16.mxu0 0
  %166 = vmatpush1.bf16.msra.mxu0 0
  %167 = vmatprep.subr.bf16.mxu0 0
  %168 = vmatpush1.bf16.msra.mxu0 0
  %169 = vmatprep.subr.bf16.mxu0 0
  %170 = vmatpush1.bf16.msra.mxu0 0
  %171 = vmatprep.subr.bf16.mxu0 0
  %172 = vmatpush1.bf16.msra.mxu0 0
  %173 = vmatprep.subr.bf16.mxu0 0
  %174 = vmatpush1.bf16.msra.mxu0 0
  %175 = vmatprep.subr.bf16.mxu0 0
  %176 = vmatpush1.bf16.msra.mxu0 0
  %177 = vmatprep.subr.bf16.mxu0 0
  %178 = vmatpush1.bf16.msra.mxu0 0
  %179 = vmatprep.subr.bf16.mxu0 0
  %180 = vmatpush1.bf16.msra.mxu0 0
  %181 = vmatprep.subr.bf16.mxu0 0
  %182 = vmatpush1.bf16.msra.mxu0 0
  %183 = vmatprep.subr.bf16.mxu0 0
  %184 = vmatpush1.bf16.msra.mxu0 0
  %185 = vmatprep.subr.bf16.mxu0 0
  %186 = vmatpush1.bf16.msra.mxu0 0
  %187 = vmatprep.subr.bf16.mxu0 0
  %188 = vmatpush1.bf16.msra.mxu0 0
  %189 = vmatprep.subr.bf16.mxu0 0
  %190 = vmatpush1.bf16.msra.mxu0 0
  %191 = vmatprep.subr.bf16.mxu0 0
  %192 = vmatpush1.bf16.msra.mxu0 0
  %193 = vmatprep.subr.bf16.mxu0 0
  %194 = vmatpush1.bf16.msra.mxu0 0
  %195 = vmatprep.mubr.bf16.mxu0 0
  %196 = vmatmul.mubr.bf16.gmra.mrb[0].mxu0 %v42
  %v197 = vpop.f32.mrb[0].mxu0
  %v198 = vadd.f32 0.0, %v197
  %v199 = vpop.f32.mrb[0].mxu0
  %v200 = vpop.f32.mrb[0].mxu0
  %v201 = vadd.f32 0.0, %v200
  %v202 = vpop.f32.mrb[0].mxu0
  %203 = vmatprep.mubr.bf16.mxu0 0
  %204 = vmatmul.mubr.bf16.gmra.mrb[0].mxu0 %v45
  %v205 = vpop.f32.mrb[0].mxu0
  %v206 = vadd.f32 0.0, %v205
  %v207 = vpop.f32.mrb[0].mxu0
  %v208 = vpop.f32.mrb[0].mxu0
  %v209 = vadd.f32 0.0, %v208
  %v210 = vpop.f32.mrb[0].mxu0
  %211 = vdwg.mxu0
  %v212 = vpack.c.bf16 %v85, %v82
  %v213 = vpack.c.bf16 %v93, %v90
  %v214 = vpack.c.bf16 %v143, %v140
  %v215 = vpack.c.bf16 %v151, %v148
  %v216 = vpack.c.bf16 %v201, %v198
  %v217 = vpack.c.bf16 %v209, %v206
  %219 = vset.pattern.permute.xlu0 0
  %220 = vperm.xlu0 %219, %v22
  %v221 = vpop.permute.xlu0 %220
  %224 = vset.pattern.permute.xlu0 0
  %225 = vperm.xlu0 %224, %v23
  %v226 = vpop.permute.xlu0 %225
  %229 = vset.pattern.permute.xlu0 0
  %230 = vperm.xlu0 %229, %v24
  %v231 = vpop.permute.xlu0 %230
  %234 = vset.pattern.permute.xlu0 0
  %235 = vperm.xlu0 %234, %v25
  %v236 = vpop.permute.xlu0 %235
  %v242 = vunpack.c.l.b16 %v18
  %v243 = vunpack.c.l.b16 %v19
  %v244 = vunpack.c.l.b16 %v20
  %v245 = vunpack.c.l.b16 %v21
  %v246 = vpack.c.b16 %v243, %v242
  %v247 = vpack.c.b16 %v245, %v244
  %vm248 = vcmask 785408
  %v250 = vsel %vm248, %v246, 0
  %v253 = vsel %vm248, %v247, 0
  %255 = vmatprep.subr.bf16.mxu0 0
  %256 = vmatpush1.bf16.msra.mxu0 %v212
  %257 = vmatprep.subr.bf16.mxu0 0
  %258 = vmatpush1.bf16.msra.mxu0 %v213
  %259 = vmatprep.subr.bf16.mxu0 0
  %260 = vmatpush1.bf16.msra.mxu0 %v214
  %261 = vmatprep.subr.bf16.mxu0 0
  %262 = vmatpush1.bf16.msra.mxu0 %v215
  %263 = vmatprep.subr.bf16.mxu0 0
  %264 = vmatpush1.bf16.msra.mxu0 %v216
  %265 = vmatprep.subr.bf16.mxu0 0
  %266 = vmatpush1.bf16.msra.mxu0 %v217
  %267 = vmatprep.subr.bf16.mxu0 0
  %268 = vmatpush1.bf16.msra.mxu0 0
  %269 = vmatprep.subr.bf16.mxu0 0
  %270 = vmatpush1.bf16.msra.mxu0 0
  %271 = vmatprep.subr.bf16.mxu0 0
  %272 = vmatpush1.bf16.msra.mxu0 0
  %273 = vmatprep.subr.bf16.mxu0 0
  %274 = vmatpush1.bf16.msra.mxu0 0
  %275 = vmatprep.subr.bf16.mxu0 0
  %276 = vmatpush1.bf16.msra.mxu0 0
  %277 = vmatprep.subr.bf16.mxu0 0
  %278 = vmatpush1.bf16.msra.mxu0 0
  %279 = vmatprep.subr.bf16.mxu0 0
  %280 = vmatpush1.bf16.msra.mxu0 0
  %281 = vmatprep.subr.bf16.mxu0 0
  %282 = vmatpush1.bf16.msra.mxu0 0
  %283 = vmatprep.subr.bf16.mxu0 0
  %284 = vmatpush1.bf16.msra.mxu0 0
  %285 = vmatprep.subr.bf16.mxu0 0
  %286 = vmatpush1.bf16.msra.mxu0 0
  %287 = vmatprep.mubr.bf16.mxu0 0
  %288 = vmatmul.mubr.bf16.gmra.mrb[0].mxu0 %v250
  %v289 = vpop.f32.mrb[0].mxu0
  %v290 = vadd.f32 %v221, %v289
  %v291 = vpop.f32.mrb[0].mxu0
  %v292 = vpop.f32.mrb[0].mxu0
  %v293 = vadd.f32 %v226, %v292
  %v294 = vpop.f32.mrb[0].mxu0
  %295 = vmatprep.mubr.bf16.mxu0 0
  %296 = vmatmul.mubr.bf16.gmra.mrb[0].mxu0 %v253
  %v297 = vpop.f32.mrb[0].mxu0
  %v298 = vadd.f32 %v231, %v297
  %v299 = vpop.f32.mrb[0].mxu0
  %v300 = vpop.f32.mrb[0].mxu0
  %v301 = vadd.f32 %v236, %v300
  %v302 = vpop.f32.mrb[0].mxu0
  %303 = vdwg.mxu0
  %v304 = vmax.f32 %v290, 0.0
  %v305 = vmax.f32 %v293, 0.0
  %v306 = vmax.f32 %v298, 0.0
  %v307 = vmax.f32 %v301, 0.0
  %v308 = vadd.f32 %v304, %v26
  %v309 = vadd.f32 %v305, %v27
  %v310 = vadd.f32 %v306, %v28
  %v311 = vadd.f32 %v307, %v29
  %312 = vst.msk [vmem:[%s4] sm:$0xff] %vm40, %v308
  %313 = vst.msk [vmem:[%s4 + $0x8] sm:$0xff] %vm40, %v309
  %314 = vst.msk [vmem:[%s4 + $0x10] sm:$0xff] %vm40, %v310
  %315 = vst.msk [vmem:[%s4 + $0x18] sm:$0xff] %vm40, %v311
  %s316 = scalar_lea.vmem %s0, 32
  %v317 = vld [vmem:[%s316] sm:$0xff]
  %v318 = vld [vmem:[%s316 + $0x8] sm:$0xff]
  %v319 = vld [vmem:[%s316 + $0x10] sm:$0xff]
  %v320 = vld [vmem:[%s316 + $0x18] sm:$0xff]
  %v321 = vpack.c.bf16 %v318, %v317
  %v322 = vpack.c.bf16 %v320, %v319
  %v323 = vld [vmem:[%s2] sm:$0xf]
  %v324 = vld [vmem:[%s2 + $0x4] sm:$0xf]
  %v327 = vunpack.c.l.b16 %v323
  %v328 = vunpack.c.l.b16 %v324
  %v329 = vpack.c.b16 %v328, %v327
  %v332 = vsel %vm40, %v321, 0
  %v335 = vsel %vm40, %v322, 0
  %337 = vmatprep.subr.bf16.mxu0 0
  %338 = vmatpush1.bf16.msra.mxu0 %v329
  %339 = vmatprep.subr.bf16.mxu0 0
  %340 = vmatpush1.bf16.msra.mxu0 0
  %341 = vmatprep.subr.bf16.mxu0 0
  %342 = vmatpush1.bf16.msra.mxu0 0
  %343 = vmatprep.subr.bf16.mxu0 0
  %344 = vmatpush1.bf16.msra.mxu0 0
  %345 = vmatprep.subr.bf16.mxu0 0
  %346 = vmatpush1.bf16.msra.mxu0 0
  %347 = vmatprep.subr.bf16.mxu0 0
  %348 = vmatpush1.bf16.msra.mxu0 0
  %349 = vmatprep.subr.bf16.mxu0 0
  %350 = vmatpush1.bf16.msra.mxu0 0
  %351 = vmatprep.subr.bf16.mxu0 0
  %352 = vmatpush1.bf16.msra.mxu0 0
  %353 = vmatprep.subr.bf16.mxu0 0
  %354 = vmatpush1.bf16.msra.mxu0 0
  %355 = vmatprep.subr.bf16.mxu0 0
  %356 = vmatpush1.bf16.msra.mxu0 0
  %357 = vmatprep.subr.bf16.mxu0 0
  %358 = vmatpush1.bf16.msra.mxu0 0
  %359 = vmatprep.subr.bf16.mxu0 0
  %360 = vmatpush1.bf16.msra.mxu0 0
  %361 = vmatprep.subr.bf16.mxu0 0
  %362 = vmatpush1.bf16.msra.mxu0 0
  %363 = vmatprep.subr.bf16.mxu0 0
  %364 = vmatpush1.bf16.msra.mxu0 0
  %365 = vmatprep.subr.bf16.mxu0 0
  %366 = vmatpush1.bf16.msra.mxu0 0
  %367 = vmatprep.subr.bf16.mxu0 0
  %368 = vmatpush1.bf16.msra.mxu0 0
  %369 = vmatprep.mubr.bf16.mxu0 0
  %370 = vmatmul.mubr.bf16.gmra.mrb[0].mxu0 %v332
  %v371 = vpop.f32.mrb[0].mxu0
  %v372 = vadd.f32 0.0, %v371
  %v373 = vpop.f32.mrb[0].mxu0
  %v374 = vpop.f32.mrb[0].mxu0
  %v375 = vadd.f32 0.0, %v374
  %v376 = vpop.f32.mrb[0].mxu0
  %377 = vmatprep.mubr.bf16.mxu0 0
  %378 = vmatmul.mubr.bf16.gmra.mrb[0].mxu0 %v335
  %v379 = vpop.f32.mrb[0].mxu0
  %v380 = vadd.f32 0.0, %v379
  %v381 = vpop.f32.mrb[0].mxu0
  %v382 = vpop.f32.mrb[0].mxu0
  %v383 = vadd.f32 0.0, %v382
  %v384 = vpop.f32.mrb[0].mxu0
  %385 = vdwg.mxu0
  %v386 = vld [vmem:[%s96] sm:$0xf]
  %v387 = vld [vmem:[%s96 + $0x4] sm:$0xf]
  %v390 = vunpack.c.l.b16 %v386
  %v391 = vunpack.c.l.b16 %v387
  %v392 = vpack.c.b16 %v391, %v390
  %394 = vmatprep.subr.bf16.mxu0 0
  %395 = vmatpush1.bf16.msra.mxu0 %v392
  %396 = vmatprep.subr.bf16.mxu0 0
  %397 = vmatpush1.bf16.msra.mxu0 0
  %398 = vmatprep.subr.bf16.mxu0 0
  %399 = vmatpush1.bf16.msra.mxu0 0
  %400 = vmatprep.subr.bf16.mxu0 0
  %401 = vmatpush1.bf16.msra.mxu0 0
  %402 = vmatprep.subr.bf16.mxu0 0
  %403 = vmatpush1.bf16.msra.mxu0 0
  %404 = vmatprep.subr.bf16.mxu0 0
  %405 = vmatpush1.bf16.msra.mxu0 0
  %406 = vmatprep.subr.bf16.mxu0 0
  %407 = vmatpush1.bf16.msra.mxu0 0
  %408 = vmatprep.subr.bf16.mxu0 0
  %409 = vmatpush1.bf16.msra.mxu0 0
  %410 = vmatprep.subr.bf16.mxu0 0
  %411 = vmatpush1.bf16.msra.mxu0 0
  %412 = vmatprep.subr.bf16.mxu0 0
  %413 = vmatpush1.bf16.msra.mxu0 0
  %414 = vmatprep.subr.bf16.mxu0 0
  %415 = vmatpush1.bf16.msra.mxu0 0
  %416 = vmatprep.subr.bf16.mxu0 0
  %417 = vmatpush1.bf16.msra.mxu0 0
  %418 = vmatprep.subr.bf16.mxu0 0
  %419 = vmatpush1.bf16.msra.mxu0 0
  %420 = vmatprep.subr.bf16.mxu0 0
  %421 = vmatpush1.bf16.msra.mxu0 0
  %422 = vmatprep.subr.bf16.mxu0 0
  %423 = vmatpush1.bf16.msra.mxu0 0
  %424 = vmatprep.subr.bf16.mxu0 0
  %425 = vmatpush1.bf16.msra.mxu0 0
  %426 = vmatprep.mubr.bf16.mxu0 0
  %427 = vmatmul.mubr.bf16.gmra.mrb[0].mxu0 %v332
  %v428 = vpop.f32.mrb[0].mxu0
  %v429 = vadd.f32 0.0, %v428
  %v430 = vpop.f32.mrb[0].mxu0
  %v431 = vpop.f32.mrb[0].mxu0
  %v432 = vadd.f32 0.0, %v431
  %v433 = vpop.f32.mrb[0].mxu0
  %434 = vmatprep.mubr.bf16.mxu0 0
  %435 = vmatmul.mubr.bf16.gmra.mrb[0].mxu0 %v335
  %v436 = vpop.f32.mrb[0].mxu0
  %v437 = vadd.f32 0.0, %v436
  %v438 = vpop.f32.mrb[0].mxu0
  %v439 = vpop.f32.mrb[0].mxu0
  %v440 = vadd.f32 0.0, %v439
  %v441 = vpop.f32.mrb[0].mxu0
  %442 = vdwg.mxu0
  %v443 = vld [vmem:[%s154] sm:$0xf]
  %v444 = vld [vmem:[%s154 + $0x4] sm:$0xf]
  %v447 = vunpack.c.l.b16 %v443
  %v448 = vunpack.c.l.b16 %v444
  %v449 = vpack.c.b16 %v448, %v447
  %451 = vmatprep.subr.bf16.mxu0 0
  %452 = vmatpush1.bf16.msra.mxu0 %v449
  %453 = vmatprep.subr.bf16.mxu0 0
  %454 = vmatpush1.bf16.msra.mxu0 0
  %455 = vmatprep.subr.bf16.mxu0 0
  %456 = vmatpush1.bf16.msra.mxu0 0
  %457 = vmatprep.subr.bf16.mxu0 0
  %458 = vmatpush1.bf16.msra.mxu0 0
  %459 = vmatprep.subr.bf16.mxu0 0
  %460 = vmatpush1.bf16.msra.mxu0 0
  %461 = vmatprep.subr.bf16.mxu0 0
  %462 = vmatpush1.bf16.msra.mxu0 0
  %463 = vmatprep.subr.bf16.mxu0 0
  %464 = vmatpush1.bf16.msra.mxu0 0
  %465 = vmatprep.subr.bf16.mxu0 0
  %466 = vmatpush1.bf16.msra.mxu0 0
  %467 = vmatprep.subr.bf16.mxu0 0
  %468 = vmatpush1.bf16.msra.mxu0 0
  %469 = vmatprep.subr.bf16.mxu0 0
  %470 = vmatpush1.bf16.msra.mxu0 0
  %471 = vmatprep.subr.bf16.mxu0 0
  %472 = vmatpush1.bf16.msra.mxu0 0
  %473 = vmatprep.subr.bf16.mxu0 0
  %474 = vmatpush1.bf16.msra.mxu0 0
  %475 = vmatprep.subr.bf16.mxu0 0
  %476 = vmatpush1.bf16.msra.mxu0 0
  %477 = vmatprep.subr.bf16.mxu0 0
  %478 = vmatpush1.bf16.msra.mxu0 0
  %479 = vmatprep.subr.bf16.mxu0 0
  %480 = vmatpush1.bf16.msra.mxu0 0
  %481 = vmatprep.subr.bf16.mxu0 0
  %482 = vmatpush1.bf16.msra.mxu0 0
  %483 = vmatprep.mubr.bf16.mxu0 0
  %484 = vmatmul.mubr.bf16.gmra.mrb[0].mxu0 %v332
  %v485 = vpop.f32.mrb[0].mxu0
  %v486 = vadd.f32 0.0, %v485
  %v487 = vpop.f32.mrb[0].mxu0
  %v488 = vpop.f32.mrb[0].mxu0
  %v489 = vadd.f32 0.0, %v488
  %v490 = vpop.f32.mrb[0].mxu0
  %491 = vmatprep.mubr.bf16.mxu0 0
  %492 = vmatmul.mubr.bf16.gmra.mrb[0].mxu0 %v335
  %v493 = vpop.f32.mrb[0].mxu0
  %v494 = vadd.f32 0.0, %v493
  %v495 = vpop.f32.mrb[0].mxu0
  %v496 = vpop.f32.mrb[0].mxu0
  %v497 = vadd.f32 0.0, %v496
  %v498 = vpop.f32.mrb[0].mxu0
  %499 = vdwg.mxu0
  %v500 = vpack.c.bf16 %v375, %v372
  %v501 = vpack.c.bf16 %v383, %v380
  %v502 = vpack.c.bf16 %v432, %v429
  %v503 = vpack.c.bf16 %v440, %v437
  %v504 = vpack.c.bf16 %v489, %v486
  %v505 = vpack.c.bf16 %v497, %v494
  %506 = vmatprep.subr.bf16.mxu0 0
  %507 = vmatpush1.bf16.msra.mxu0 %v500
  %508 = vmatprep.subr.bf16.mxu0 0
  %509 = vmatpush1.bf16.msra.mxu0 %v501
  %510 = vmatprep.subr.bf16.mxu0 0
  %511 = vmatpush1.bf16.msra.mxu0 %v502
  %512 = vmatprep.subr.bf16.mxu0 0
  %513 = vmatpush1.bf16.msra.mxu0 %v503
  %514 = vmatprep.subr.bf16.mxu0 0
  %515 = vmatpush1.bf16.msra.mxu0 %v504
  %516 = vmatprep.subr.bf16.mxu0 0
  %517 = vmatpush1.bf16.msra.mxu0 %v505
  %518 = vmatprep.subr.bf16.mxu0 0
  %519 = vmatpush1.bf16.msra.mxu0 0
  %520 = vmatprep.subr.bf16.mxu0 0
  %521 = vmatpush1.bf16.msra.mxu0 0
  %522 = vmatprep.subr.bf16.mxu0 0
  %523 = vmatpush1.bf16.msra.mxu0 0
  %524 = vmatprep.subr.bf16.mxu0 0
  %525 = vmatpush1.bf16.msra.mxu0 0
  %526 = vmatprep.subr.bf16.mxu0 0
  %527 = vmatpush1.bf16.msra.mxu0 0
  %528 = vmatprep.subr.bf16.mxu0 0
  %529 = vmatpush1.bf16.msra.mxu0 0
  %530 = vmatprep.subr.bf16.mxu0 0
  %531 = vmatpush1.bf16.msra.mxu0 0
  %532 = vmatprep.subr.bf16.mxu0 0
  %533 = vmatpush1.bf16.msra.mxu0 0
  %534 = vmatprep.subr.bf16.mxu0 0
  %535 = vmatpush1.bf16.msra.mxu0 0
  %536 = vmatprep.subr.bf16.mxu0 0
  %537 = vmatpush1.bf16.msra.mxu0 0
  %538 = vmatprep.mubr.bf16.mxu0 0
  %539 = vmatmul.mubr.bf16.gmra.mrb[0].mxu0 %v250
  %v540 = vpop.f32.mrb[0].mxu0
  %v541 = vadd.f32 %v221, %v540
  %v542 = vpop.f32.mrb[0].mxu0
  %v543 = vpop.f32.mrb[0].mxu0
  %v544 = vadd.f32 %v226, %v543
  %v545 = vpop.f32.mrb[0].mxu0
  %546 = vmatprep.mubr.bf16.mxu0 0
  %547 = vmatmul.mubr.bf16.gmra.mrb[0].mxu0 %v253
  %v548 = vpop.f32.mrb[0].mxu0
  %v549 = vadd.f32 %v231, %v548
  %v550 = vpop.f32.mrb[0].mxu0
  %v551 = vpop.f32.mrb[0].mxu0
  %v552 = vadd.f32 %v236, %v551
  %v553 = vpop.f32.mrb[0].mxu0
  %554 = vdwg.mxu0
  %v555 = vmax.f32 %v541, 0.0
  %v556 = vmax.f32 %v544, 0.0
  %v557 = vmax.f32 %v549, 0.0
  %v558 = vmax.f32 %v552, 0.0
  %v559 = vadd.f32 %v555, %v317
  %v560 = vadd.f32 %v556, %v318
  %v561 = vadd.f32 %v557, %v319
  %v562 = vadd.f32 %v558, %v320
  %s563 = scalar_lea.vmem %s4, 32
  %564 = vst.msk [vmem:[%s563] sm:$0xff] %vm40, %v559
  %565 = vst.msk [vmem:[%s563 + $0x8] sm:$0xff] %vm40, %v560
  %566 = vst.msk [vmem:[%s563 + $0x10] sm:$0xff] %vm40, %v561
  %567 = vst.msk [vmem:[%s563 + $0x18] sm:$0xff] %vm40, %v562
  // Predicated region
  $region18: #{tpu_custom_call.1} parent=0 // pred_check
    _
  $region19: #{tpu_custom_call.1} parent=0 // pred_check_branch
    %569 = sbr.rel (0) target = $region21
  $region20: #{tpu_custom_call.1} parent=0 // pred_region
    _
  $region21: #{tpu_custom_call.1} parent=0 // pred_fallthru
    _
  // Predicated region
  $region22: #{tpu_custom_call.1} parent=0 // pred_check
    _
  $region23: #{tpu_custom_call.1} parent=0 // pred_check_branch
    %571 = sbr.rel (0) target = $region25
  $region24: #{tpu_custom_call.1} parent=0 // pred_region
    _
  $region25: #{tpu_custom_call.1} parent=0 // pred_fallthru
    _

</llo_original>
